<compile_context>
chip_gen: v6e
topology: v6e:2x2x1
jax: 0.10.0
libtpu: 0.0.40
codegen_flags: <defaults>
</compile_context>

<pallas_src>
import functools

import jax
import jax.numpy as jnp
from jax.experimental import pallas as pl
from jax.experimental.pallas import tpu as pltpu


def _vgg_classifier_kernel(x_ref, w_ref, b_ref, o_ref):
    """One batch tile: o = mean_t(x) @ W + b.

    x_ref: (T, tb, H)   f32   -- full time extent for this batch tile
    w_ref: (H, C_pad)   bf16  -- resident weights (constant index_map)
    b_ref: (1, C_pad)   f32
    o_ref: (tb, C_pad)  f32
    """
    # Mean over the step dim in f32 on the VPU (keep elementwise math f32).
    x_mean = jnp.mean(x_ref[...], axis=0)                       # (tb, H) f32
    # Single MXU matmul: bf16 inputs, f32 accumulation.
    w = w_ref[...]
    acc = jnp.dot(x_mean.astype(w.dtype), w,
                  preferred_element_type=jnp.float32)           # (tb, C_pad) f32
    o_ref[...] = (acc + b_ref[...]).astype(o_ref.dtype)


def _pick_batch_tile(B):
    # Whole batch in one tile when small; otherwise an MXU-friendly tile that
    # respects the (8, 128) sublane constraint.
    if B <= 256:
        return B
    for tb in (256, 128, 64, 32, 16, 8):
        if B % tb == 0:
            return tb
    return B


@functools.partial(jax.jit, static_argnames=("num_classes",))
def vgg_classifier_forward(x, w, b, *, num_classes):
    """x: [T, B, H] f32, w: [H, C_pad] (bf16), b: [C_pad] f32 -> [B, num_classes] f32."""
    T, B, H = x.shape
    C_pad = w.shape[1]
    tb = _pick_batch_tile(B)

    out = pl.pallas_call(
        _vgg_classifier_kernel,
        out_shape=jax.ShapeDtypeStruct((B, C_pad), jnp.float32),
        grid_spec=pltpu.PrefetchScalarGridSpec(
            num_scalar_prefetch=0,
            grid=(pl.cdiv(B, tb),),                 # batch tiles (1 for small B)
            in_specs=[
                # Full time extent per tile -> T-reduction happens in-body,
                # so there is no reduction grid axis and no scratch accumulator.
                pl.BlockSpec((T, tb, H), lambda i: (0, i, 0)),   # x tile (f32)
                # Constant index_map -> W stays resident across batch tiles.
                pl.BlockSpec((H, C_pad), lambda i: (0, 0)),      # W (bf16)
                pl.BlockSpec((1, C_pad), lambda i: (0, 0)),      # bias (f32)
            ],
            out_specs=pl.BlockSpec((tb, C_pad), lambda i: (i, 0)),
        ),
        compiler_params=pltpu.CompilerParams(
            # Batch axis is independent -> shardable across TensorCores (v7x).
            dimension_semantics=("parallel",),
        ),
    )(x, w, b.reshape(1, C_pad))

    return out[:, :num_classes]


if __name__ == "__main__":
    # Config mirroring VGGClassifier for a "vgg5"/"vgg9"-style model:
    #   hidden_dim = 1024, num_classes = 10, bias enabled (args.snn = False).
    T = 4            # number of time steps (dim averaged by forward)
    B = 2            # batch
    HIDDEN = 1024    # hidden_dim for layer_num in [5, 9]
    NUM_CLASSES = 10
    C_PAD = 128      # pad class dim to a lane-dense multiple of 128

    key = jax.random.PRNGKey(0)
    kx, kw, kb = jax.random.split(key, 3)

    x = jax.random.normal(kx, (T, B, HIDDEN), dtype=jnp.float32)

    # Deterministic synthetic nn.Linear(hidden_dim, num_classes) parameters.
    bound = 1.0 / (HIDDEN ** 0.5)
    w_real = jax.random.uniform(
        kw, (HIDDEN, NUM_CLASSES), minval=-bound, maxval=bound, dtype=jnp.float32)
    b_real = jax.random.uniform(
        kb, (NUM_CLASSES,), minval=-bound, maxval=bound, dtype=jnp.float32)

    # Zero-pad class dim to 128 (lane-dense output); store W in bf16 to halve
    # the dominant HBM transfer. Bias stays f32.
    w_pad = jnp.zeros((HIDDEN, C_PAD), jnp.float32).at[:, :NUM_CLASSES].set(w_real)
    w_bf16 = w_pad.astype(jnp.bfloat16)
    b_pad = jnp.zeros((C_PAD,), jnp.float32).at[:NUM_CLASSES].set(b_real)

    out = vgg_classifier_forward(x, w_bf16, b_pad, num_classes=NUM_CLASSES)
    out = jax.block_until_ready(out)

    # Reference: plain-JAX f32 with the original (unquantized) weights — same
    # semantics as the PyTorch forward. Tolerance covers the bf16 weight /
    # activation quantization inside the kernel (measured error ~1e-3).
    ref = jnp.mean(jnp.einsum("tbh,hc->tbc", x, w_real) + b_real, axis=0)
    assert out.shape == (B, NUM_CLASSES)
    assert jnp.allclose(out, ref, atol=1e-2, rtol=1e-2), "mismatch vs reference"

    print("KERNEL_OK")
</pallas_src>

<mosaic_0001>
module attributes {stable_mosaic.version = 11 : i64} {
  func.func @_vgg_classifier_kernel(%arg0: i32, %arg1: memref<4x2x1024xf32, #tpu.memory_space<vmem>>, %arg2: memref<1024x128xbf16, #tpu.memory_space<vmem>>, %arg3: memref<1x128xf32, #tpu.memory_space<vmem>>, %arg4: memref<2x128xf32, #tpu.memory_space<vmem>>) attributes {dimension_semantics = [#tpu.dimension_semantics<parallel>], iteration_bounds = array<i64: 1>, scalar_prefetch = 0 : i64, scratch_operands = 0 : i64, tpu.core_type = #tpu.core_type<tc>, window_params = [{transform_indices = @transform_0, window_bounds = array<i64: 4, 2, 1024>}, {pipeline_mode = #tpu.pipeline_mode<synchronous>, transform_indices = @transform_1, window_bounds = array<i64: 1024, 128>}, {pipeline_mode = #tpu.pipeline_mode<synchronous>, transform_indices = @transform_2, window_bounds = array<i64: 1, 128>}, {transform_indices = @transform_3, window_bounds = array<i64: 2, 128>}]} {
    %c0 = arith.constant 0 : index
    %c0_0 = arith.constant 0 : index
    %c0_1 = arith.constant 0 : index
    %0 = vector.load %arg1[%c0, %c0_0, %c0_1] : memref<4x2x1024xf32, #tpu.memory_space<vmem>>, vector<4x2x1024xf32>
    %cst = arith.constant dense<0.000000e+00> : vector<2x1024xf32>
    %1 = vector.multi_reduction <add>, %0, %cst [0] : vector<4x2x1024xf32> to vector<2x1024xf32>
    %cst_2 = arith.constant 4.000000e+00 : f32
    %2 = vector.broadcast %cst_2 : f32 to vector<2x1024xf32>
    %3 = arith.divf %1, %2 : vector<2x1024xf32>
    %c0_3 = arith.constant 0 : index
    %c0_4 = arith.constant 0 : index
    %4 = vector.load %arg2[%c0_3, %c0_4] : memref<1024x128xbf16, #tpu.memory_space<vmem>>, vector<1024x128xbf16>
    %5 = arith.truncf %3 : vector<2x1024xf32> to vector<2x1024xbf16>
    %cst_5 = arith.constant dense<0.000000e+00> : vector<2x128xf32>
    %6 = tpu.matmul %5, %4, %cst_5 {dimension_numbers = #tpu.dot_dimension_numbers<[1], [0], [0], [1], [0, 0, 1, 1], [], []>} : vector<2x1024xbf16>, vector<1024x128xbf16>, vector<2x128xf32> -> vector<2x128xf32>
    %c0_6 = arith.constant 0 : index
    %c0_7 = arith.constant 0 : index
    %7 = vector.load %arg3[%c0_6, %c0_7] : memref<1x128xf32, #tpu.memory_space<vmem>>, vector<1x128xf32>
    %8 = vector.broadcast %7 : vector<1x128xf32> to vector<2x128xf32>
    %9 = arith.addf %6, %8 : vector<2x128xf32>
    %c0_8 = arith.constant 0 : index
    %c0_9 = arith.constant 0 : index
    %10 = vector.load %arg4[%c0_8, %c0_9] : memref<2x128xf32, #tpu.memory_space<vmem>>, vector<2x128xf32>
    tpu.vector_store %arg4[%c0_8, %c0_9], %9 {strides = array<i32>} : memref<2x128xf32, #tpu.memory_space<vmem>>, vector<2x128xf32>,
    return
  }
  func.func @transform_0(%arg0: i32) -> (i32, i32, i32) {
    %c0_i32 = arith.constant 0 : i32
    %c0_i32_0 = arith.constant 0 : i32
    %c0_i32_1 = arith.constant 0 : i32
    return %c0_i32, %arg0, %c0_i32_0 : i32, i32, i32
  }
  func.func @transform_1(%arg0: i32) -> (i32, i32) {
    %c0_i32 = arith.constant 0 : i32
    %c0_i32_0 = arith.constant 0 : i32
    %c0_i32_1 = arith.constant 0 : i32
    return %c0_i32, %c0_i32_0 : i32, i32
  }
  func.func @transform_2(%arg0: i32) -> (i32, i32) {
    %c0_i32 = arith.constant 0 : i32
    %c0_i32_0 = arith.constant 0 : i32
    %c0_i32_1 = arith.constant 0 : i32
    return %c0_i32, %c0_i32_0 : i32, i32
  }
  func.func @transform_3(%arg0: i32) -> (i32, i32) {
    %c0_i32 = arith.constant 0 : i32
    %c0_i32_0 = arith.constant 0 : i32
    return %arg0, %c0_i32 : i32, i32
  }
}

</mosaic_0001>

<llo_original>
// kernel: vgg_classifier_forward.1
$region0: #{vgg_classifier_forward.1}
  #allocation0 [shape = 'u32[]', space=smem, size = 0x4, offset = 0x4, fixed_abs, tag = 'smem constant byte address 0x4 - core index']
  #allocation1 [shape = 'u32[144,128]{1,0:T(1,128)}', space=vmem, size = 0x12000, scoped, tag = 'internal scratch']
  %s0 = inlined_call_operand.hbm [shape: f32[4,2,1024], index: 0, kind: input, shape index: {}]
  %s1 = inlined_call_operand.hbm [shape: bf16[1024,128], index: 1, kind: input, shape index: {}]
  %s2 = inlined_call_operand.vmem [shape: f32[1,128], index: 2, kind: input, shape index: {}]
  %s3 = inlined_call_operand.hbm [shape: f32[2,128], index: 3, kind: output, shape index: {}]
  %s4 = sld [smem:[#allocation0]]
  $region30: #{vgg_classifier_forward.1} parent=0
    _
  %s6 = ssub.s32 1, %s4
  %s7 = scalar_select 0, %s6, %s4
  $region1: #{vgg_classifier_forward.1} parent=0
    #allocation2 [shape = 'u8[32768]{0}', space=vmem, size = 0x8000, scoped, tag = 'input window, operand 0, single buffered']
    #allocation3 [shape = 's32[1]{0}', space=sflag, size = 0x4, scoped, tag = 'scoped memory for vgg_classifier_forward.1']
    #allocation4 [shape = 's32[1]{0}', space=sflag, size = 0x4, scoped, tag = 'scoped memory for vgg_classifier_forward.1']
    #allocation5 [shape = 'u8[262144]{0}', space=vmem, size = 0x40000, scoped, tag = 'input window, operand 1, single buffered']
    #allocation6 [shape = 's32[1]{0}', space=sflag, size = 0x4, scoped, tag = 'scoped memory for vgg_classifier_forward.1']
    #allocation7 [shape = 'u8[1024]{0}', space=vmem, size = 0x400, scoped, tag = 'output window, operand 0, single buffered']
    %8 = vsyncpa [#allocation3], 0
    %9 = vsyncpa [#allocation6], 0
    %10 = vsyncpa [#allocation4], 0
    // Predicated region
    $region2: #{vgg_classifier_forward.1} parent=1 // pred_check
      _
    $region3: #{vgg_classifier_forward.1} parent=1 // pred_check_branch
      %12 = sbr.rel (0) target = $region5
    $region4: #{vgg_classifier_forward.1} parent=1 // pred_region
      %s14 = ssub.s32 1024, 1024
      %15 = vsyncadd [#allocation3], %s14
      %s16 = sshll.u32 [#allocation2], 4
      %s17 = int_to_ptr.vmem [resolvable:$true] %s16
      %22 = dma.hbm_to_vmem [thread:$0]  %s0, 1024, %s17, [#allocation3], 256, 256, 16
    $region5: #{vgg_classifier_forward.1} parent=1 // pred_fallthru
      _
    // Predicated region
    $region6: #{vgg_classifier_forward.1} parent=1 // pred_check
      _
    $region7: #{vgg_classifier_forward.1} parent=1 // pred_check_branch
      %24 = sbr.rel (0) target = $region9
    $region8: #{vgg_classifier_forward.1} parent=1 // pred_region
      %s26 = ssub.s32 8192, 8192
      %27 = vsyncadd [#allocation6], %s26
      %s28 = sshll.u32 [#allocation5], 4
      %s29 = int_to_ptr.vmem [resolvable:$true] %s28
      %34 = dma.hbm_to_vmem [thread:$0]  %s1, 8192, %s29, [#allocation6], 64, 64, 4
    $region9: #{vgg_classifier_forward.1} parent=1 // pred_fallthru
      _
    // Predicated region
    $region10: #{vgg_classifier_forward.1} parent=1 // pred_check
      _
    $region11: #{vgg_classifier_forward.1} parent=1 // pred_check_branch
      %36 = sbr.rel (0) target = $region13
    $region12: #{vgg_classifier_forward.1} parent=1 // pred_region
      _
    $region13: #{vgg_classifier_forward.1} parent=1 // pred_fallthru
      _
    // Predicated region
    $region14: #{vgg_classifier_forward.1} parent=1 // pred_check
      _
    $region15: #{vgg_classifier_forward.1} parent=1 // pred_check_branch
      %38 = sbr.rel (0) target = $region17
    $region16: #{vgg_classifier_forward.1} parent=1 // pred_region
      %39 = dma.done [#allocation3], 1024
    $region17: #{vgg_classifier_forward.1} parent=1 // pred_fallthru
      _
    // Predicated region
    $region18: #{vgg_classifier_forward.1} parent=1 // pred_check
      _
    $region19: #{vgg_classifier_forward.1} parent=1 // pred_check_branch
      %41 = sbr.rel (0) target = $region21
    $region20: #{vgg_classifier_forward.1} parent=1 // pred_region
      %42 = dma.done [#allocation6], 8192
    $region21: #{vgg_classifier_forward.1} parent=1 // pred_fallthru
      _
    %v44 = vld [vmem:[#allocation2] sm:$0xff]
    %v45 = vld [vmem:[#allocation2 + $0x8] sm:$0xff]
    %v46 = vld [vmem:[#allocation2 + $0x10] sm:$0xff]
    %v47 = vld [vmem:[#allocation2 + $0x18] sm:$0xff]
    %v48 = vld [vmem:[#allocation2 + $0x20] sm:$0xff]
    %v49 = vld [vmem:[#allocation2 + $0x28] sm:$0xff]
    %v50 = vld [vmem:[#allocation2 + $0x30] sm:$0xff]
    %v51 = vld [vmem:[#allocation2 + $0x38] sm:$0xff]
    %v60 = vcombine.high %v44, %v44
    %v62 = vunpack.c.l.s4 1983009808
    %v63 = vunpack.c.0.s8 %v62
    %v64 = vlaneseq
    %v65 = vshrl.u32 %v64, 7
    %v66 = vsub.s32 %v63, %v65
    %v67 = vrot.slane %v44, %v66
    %v69 = vunpack.c.l.s4 1983009808
    %v70 = vunpack.c.0.s8 %v69
    %v71 = vlaneseq
    %v72 = vshrl.u32 %v71, 7
    %v73 = vsub.s32 %v70, %v72
    %v74 = vrot.slane %v60, %v73
    %v75 = vcombine.high %v67, %v67
    %v76 = vcombine.high %v74, %v74
    %v77 = vcombine.high %v45, %v45
    %v79 = vunpack.c.l.s4 1983009808
    %v80 = vunpack.c.0.s8 %v79
    %v81 = vlaneseq
    %v82 = vshrl.u32 %v81, 7
    %v83 = vsub.s32 %v80, %v82
    %v84 = vrot.slane %v45, %v83
    %v86 = vunpack.c.l.s4 1983009808
    %v87 = vunpack.c.0.s8 %v86
    %v88 = vlaneseq
    %v89 = vshrl.u32 %v88, 7
    %v90 = vsub.s32 %v87, %v89
    %v91 = vrot.slane %v77, %v90
    %v92 = vcombine.high %v84, %v84
    %v93 = vcombine.high %v91, %v91
    %v94 = vcombine.high %v46, %v46
    %v96 = vunpack.c.l.s4 1983009808
    %v97 = vunpack.c.0.s8 %v96
    %v98 = vlaneseq
    %v99 = vshrl.u32 %v98, 7
    %v100 = vsub.s32 %v97, %v99
    %v101 = vrot.slane %v46, %v100
    %v103 = vunpack.c.l.s4 1983009808
    %v104 = vunpack.c.0.s8 %v103
    %v105 = vlaneseq
    %v106 = vshrl.u32 %v105, 7
    %v107 = vsub.s32 %v104, %v106
    %v108 = vrot.slane %v94, %v107
    %v109 = vcombine.high %v101, %v101
    %v110 = vcombine.high %v108, %v108
    %v111 = vcombine.high %v47, %v47
    %v113 = vunpack.c.l.s4 1983009808
    %v114 = vunpack.c.0.s8 %v113
    %v115 = vlaneseq
    %v116 = vshrl.u32 %v115, 7
    %v117 = vsub.s32 %v114, %v116
    %v118 = vrot.slane %v47, %v117
    %v120 = vunpack.c.l.s4 1983009808
    %v121 = vunpack.c.0.s8 %v120
    %v122 = vlaneseq
    %v123 = vshrl.u32 %v122, 7
    %v124 = vsub.s32 %v121, %v123
    %v125 = vrot.slane %v111, %v124
    %v126 = vcombine.high %v118, %v118
    %v127 = vcombine.high %v125, %v125
    %v128 = vcombine.high %v48, %v48
    %v130 = vunpack.c.l.s4 1983009808
    %v131 = vunpack.c.0.s8 %v130
    %v132 = vlaneseq
    %v133 = vshrl.u32 %v132, 7
    %v134 = vsub.s32 %v131, %v133
    %v135 = vrot.slane %v48, %v134
    %v137 = vunpack.c.l.s4 1983009808
    %v138 = vunpack.c.0.s8 %v137
    %v139 = vlaneseq
    %v140 = vshrl.u32 %v139, 7
    %v141 = vsub.s32 %v138, %v140
    %v142 = vrot.slane %v128, %v141
    %v143 = vcombine.high %v135, %v135
    %v144 = vcombine.high %v142, %v142
    %v145 = vcombine.high %v49, %v49
    %v147 = vunpack.c.l.s4 1983009808
    %v148 = vunpack.c.0.s8 %v147
    %v149 = vlaneseq
    %v150 = vshrl.u32 %v149, 7
    %v151 = vsub.s32 %v148, %v150
    %v152 = vrot.slane %v49, %v151
    %v154 = vunpack.c.l.s4 1983009808
    %v155 = vunpack.c.0.s8 %v154
    %v156 = vlaneseq
    %v157 = vshrl.u32 %v156, 7
    %v158 = vsub.s32 %v155, %v157
    %v159 = vrot.slane %v145, %v158
    %v160 = vcombine.high %v152, %v152
    %v161 = vcombine.high %v159, %v159
    %v162 = vcombine.high %v50, %v50
    %v164 = vunpack.c.l.s4 1983009808
    %v165 = vunpack.c.0.s8 %v164
    %v166 = vlaneseq
    %v167 = vshrl.u32 %v166, 7
    %v168 = vsub.s32 %v165, %v167
    %v169 = vrot.slane %v50, %v168
    %v171 = vunpack.c.l.s4 1983009808
    %v172 = vunpack.c.0.s8 %v171
    %v173 = vlaneseq
    %v174 = vshrl.u32 %v173, 7
    %v175 = vsub.s32 %v172, %v174
    %v176 = vrot.slane %v162, %v175
    %v177 = vcombine.high %v169, %v169
    %v178 = vcombine.high %v176, %v176
    %v179 = vcombine.high %v51, %v51
    %v181 = vunpack.c.l.s4 1983009808
    %v182 = vunpack.c.0.s8 %v181
    %v183 = vlaneseq
    %v184 = vshrl.u32 %v183, 7
    %v185 = vsub.s32 %v182, %v184
    %v186 = vrot.slane %v51, %v185
    %v188 = vunpack.c.l.s4 1983009808
    %v189 = vunpack.c.0.s8 %v188
    %v190 = vlaneseq
    %v191 = vshrl.u32 %v190, 7
    %v192 = vsub.s32 %v189, %v191
    %v193 = vrot.slane %v179, %v192
    %v194 = vcombine.high %v186, %v186
    %v195 = vcombine.high %v193, %v193
    %vm228 = vcmask 1041408
    %v229 = vsel %vm228, %v67, 0.0
    %v230 = vsel %vm228, %v101, 0.0
    %v231 = vadd.f32 %v229, %v230
    %v232 = vsel %vm228, %v135, 0.0
    %v233 = vadd.f32 %v231, %v232
    %v234 = vsel %vm228, %v169, 0.0
    %v235 = vadd.f32 %v233, %v234
    %v236 = vsel %vm228, %v75, 0.0
    %v237 = vsel %vm228, %v109, 0.0
    %v238 = vadd.f32 %v236, %v237
    %v239 = vsel %vm228, %v143, 0.0
    %v240 = vadd.f32 %v238, %v239
    %v241 = vsel %vm228, %v177, 0.0
    %v242 = vadd.f32 %v240, %v241
    %v243 = vsel %vm228, %v74, 0.0
    %v244 = vsel %vm228, %v108, 0.0
    %v245 = vadd.f32 %v243, %v244
    %v246 = vsel %vm228, %v142, 0.0
    %v247 = vadd.f32 %v245, %v246
    %v248 = vsel %vm228, %v176, 0.0
    %v249 = vadd.f32 %v247, %v248
    %v250 = vsel %vm228, %v76, 0.0
    %v251 = vsel %vm228, %v110, 0.0
    %v252 = vadd.f32 %v250, %v251
    %v253 = vsel %vm228, %v144, 0.0
    %v254 = vadd.f32 %v252, %v253
    %v255 = vsel %vm228, %v178, 0.0
    %v256 = vadd.f32 %v254, %v255
    %v257 = vsel %vm228, %v84, 0.0
    %v258 = vsel %vm228, %v118, 0.0
    %v259 = vadd.f32 %v257, %v258
    %v260 = vsel %vm228, %v152, 0.0
    %v261 = vadd.f32 %v259, %v260
    %v262 = vsel %vm228, %v186, 0.0
    %v263 = vadd.f32 %v261, %v262
    %v264 = vsel %vm228, %v92, 0.0
    %v265 = vsel %vm228, %v126, 0.0
    %v266 = vadd.f32 %v264, %v265
    %v267 = vsel %vm228, %v160, 0.0
    %v268 = vadd.f32 %v266, %v267
    %v269 = vsel %vm228, %v194, 0.0
    %v270 = vadd.f32 %v268, %v269
    %v271 = vsel %vm228, %v91, 0.0
    %v272 = vsel %vm228, %v125, 0.0
    %v273 = vadd.f32 %v271, %v272
    %v274 = vsel %vm228, %v159, 0.0
    %v275 = vadd.f32 %v273, %v274
    %v276 = vsel %vm228, %v193, 0.0
    %v277 = vadd.f32 %v275, %v276
    %v278 = vsel %vm228, %v93, 0.0
    %v279 = vsel %vm228, %v127, 0.0
    %v280 = vadd.f32 %v278, %v279
    %v281 = vsel %vm228, %v161, 0.0
    %v282 = vadd.f32 %v280, %v281
    %v283 = vsel %vm228, %v195, 0.0
    %v284 = vadd.f32 %v282, %v283
    %v285 = vrcp.pop 4.0
    %v286 = vmul.f32 %v235, %v285
    %v287 = vmul.f32 %v242, %v285
    %v288 = vmul.f32 %v249, %v285
    %v289 = vmul.f32 %v256, %v285
    %v290 = vmul.f32 %v263, %v285
    %v291 = vmul.f32 %v270, %v285
    %v292 = vmul.f32 %v277, %v285
    %v293 = vmul.f32 %v284, %v285
    %v294 = vld [vmem:[#allocation5] sm:$0xf]
    %v295 = vld [vmem:[#allocation5 + $0x4] sm:$0xf]
    %v296 = vld [vmem:[#allocation5 + $0x8] sm:$0xf]
    %v297 = vld [vmem:[#allocation5 + $0xc] sm:$0xf]
    %v298 = vld [vmem:[#allocation5 + $0x10] sm:$0xf]
    %v299 = vld [vmem:[#allocation5 + $0x14] sm:$0xf]
    %v300 = vld [vmem:[#allocation5 + $0x18] sm:$0xf]
    %v301 = vld [vmem:[#allocation5 + $0x1c] sm:$0xf]
    %v302 = vld [vmem:[#allocation5 + $0x20] sm:$0xf]
    %v303 = vld [vmem:[#allocation5 + $0x24] sm:$0xf]
    %v304 = vld [vmem:[#allocation5 + $0x28] sm:$0xf]
    %v305 = vld [vmem:[#allocation5 + $0x2c] sm:$0xf]
    %v306 = vld [vmem:[#allocation5 + $0x30] sm:$0xf]
    %v307 = vld [vmem:[#allocation5 + $0x34] sm:$0xf]
    %v308 = vld [vmem:[#allocation5 + $0x38] sm:$0xf]
    %v309 = vld [vmem:[#allocation5 + $0x3c] sm:$0xf]
    %v310 = vld [vmem:[#allocation5 + $0x40] sm:$0xf]
    %v311 = vld [vmem:[#allocation5 + $0x44] sm:$0xf]
    %v312 = vld [vmem:[#allocation5 + $0x48] sm:$0xf]
    %v313 = vld [vmem:[#allocation5 + $0x4c] sm:$0xf]
    %v314 = vld [vmem:[#allocation5 + $0x50] sm:$0xf]
    %v315 = vld [vmem:[#allocation5 + $0x54] sm:$0xf]
    %v316 = vld [vmem:[#allocation5 + $0x58] sm:$0xf]
    %v317 = vld [vmem:[#allocation5 + $0x5c] sm:$0xf]
    %v318 = vld [vmem:[#allocation5 + $0x60] sm:$0xf]
    %v319 = vld [vmem:[#allocation5 + $0x64] sm:$0xf]
    %v320 = vld [vmem:[#allocation5 + $0x68] sm:$0xf]
    %v321 = vld [vmem:[#allocation5 + $0x6c] sm:$0xf]
    %v322 = vld [vmem:[#allocation5 + $0x70] sm:$0xf]
    %v323 = vld [vmem:[#allocation5 + $0x74] sm:$0xf]
    %v324 = vld [vmem:[#allocation5 + $0x78] sm:$0xf]
    %v325 = vld [vmem:[#allocation5 + $0x7c] sm:$0xf]
    %v326 = vld [vmem:[#allocation5 + $0x80] sm:$0xf]
    %v327 = vld [vmem:[#allocation5 + $0x84] sm:$0xf]
    %v328 = vld [vmem:[#allocation5 + $0x88] sm:$0xf]
    %v329 = vld [vmem:[#allocation5 + $0x8c] sm:$0xf]
    %v330 = vld [vmem:[#allocation5 + $0x90] sm:$0xf]
    %v331 = vld [vmem:[#allocation5 + $0x94] sm:$0xf]
    %v332 = vld [vmem:[#allocation5 + $0x98] sm:$0xf]
    %v333 = vld [vmem:[#allocation5 + $0x9c] sm:$0xf]
    %v334 = vld [vmem:[#allocation5 + $0xa0] sm:$0xf]
    %v335 = vld [vmem:[#allocation5 + $0xa4] sm:$0xf]
    %v336 = vld [vmem:[#allocation5 + $0xa8] sm:$0xf]
    %v337 = vld [vmem:[#allocation5 + $0xac] sm:$0xf]
    %v338 = vld [vmem:[#allocation5 + $0xb0] sm:$0xf]
    %v339 = vld [vmem:[#allocation5 + $0xb4] sm:$0xf]
    %v340 = vld [vmem:[#allocation5 + $0xb8] sm:$0xf]
    %v341 = vld [vmem:[#allocation5 + $0xbc] sm:$0xf]
    %v342 = vld [vmem:[#allocation5 + $0xc0] sm:$0xf]
    %v343 = vld [vmem:[#allocation5 + $0xc4] sm:$0xf]
    %v344 = vld [vmem:[#allocation5 + $0xc8] sm:$0xf]
    %v345 = vld [vmem:[#allocation5 + $0xcc] sm:$0xf]
    %v346 = vld [vmem:[#allocation5 + $0xd0] sm:$0xf]
    %v347 = vld [vmem:[#allocation5 + $0xd4] sm:$0xf]
    %v348 = vld [vmem:[#allocation5 + $0xd8] sm:$0xf]
    %v349 = vld [vmem:[#allocation5 + $0xdc] sm:$0xf]
    %v350 = vld [vmem:[#allocation5 + $0xe0] sm:$0xf]
    %v351 = vld [vmem:[#allocation5 + $0xe4] sm:$0xf]
    %v352 = vld [vmem:[#allocation5 + $0xe8] sm:$0xf]
    %v353 = vld [vmem:[#allocation5 + $0xec] sm:$0xf]
    %v354 = vld [vmem:[#allocation5 + $0xf0] sm:$0xf]
    %v355 = vld [vmem:[#allocation5 + $0xf4] sm:$0xf]
    %v356 = vld [vmem:[#allocation5 + $0xf8] sm:$0xf]
    %v357 = vld [vmem:[#allocation5 + $0xfc] sm:$0xf]
    %v358 = vld [vmem:[#allocation5 + $0x100] sm:$0xf]
    %v359 = vld [vmem:[#allocation5 + $0x104] sm:$0xf]
    %v360 = vld [vmem:[#allocation5 + $0x108] sm:$0xf]
    %v361 = vld [vmem:[#allocation5 + $0x10c] sm:$0xf]
    %v362 = vld [vmem:[#allocation5 + $0x110] sm:$0xf]
    %v363 = vld [vmem:[#allocation5 + $0x114] sm:$0xf]
    %v364 = vld [vmem:[#allocation5 + $0x118] sm:$0xf]
    %v365 = vld [vmem:[#allocation5 + $0x11c] sm:$0xf]
    %v366 = vld [vmem:[#allocation5 + $0x120] sm:$0xf]
    %v367 = vld [vmem:[#allocation5 + $0x124] sm:$0xf]
    %v368 = vld [vmem:[#allocation5 + $0x128] sm:$0xf]
    %v369 = vld [vmem:[#allocation5 + $0x12c] sm:$0xf]
    %v370 = vld [vmem:[#allocation5 + $0x130] sm:$0xf]
    %v371 = vld [vmem:[#allocation5 + $0x134] sm:$0xf]
    %v372 = vld [vmem:[#allocation5 + $0x138] sm:$0xf]
    %v373 = vld [vmem:[#allocation5 + $0x13c] sm:$0xf]
    %v374 = vld [vmem:[#allocation5 + $0x140] sm:$0xf]
    %v375 = vld [vmem:[#allocation5 + $0x144] sm:$0xf]
    %v376 = vld [vmem:[#allocation5 + $0x148] sm:$0xf]
    %v377 = vld [vmem:[#allocation5 + $0x14c] sm:$0xf]
    %v378 = vld [vmem:[#allocation5 + $0x150] sm:$0xf]
    %v379 = vld [vmem:[#allocation5 + $0x154] sm:$0xf]
    %v380 = vld [vmem:[#allocation5 + $0x158] sm:$0xf]
    %v381 = vld [vmem:[#allocation5 + $0x15c] sm:$0xf]
    %v382 = vld [vmem:[#allocation5 + $0x160] sm:$0xf]
    %v383 = vld [vmem:[#allocation5 + $0x164] sm:$0xf]
    %v384 = vld [vmem:[#allocation5 + $0x168] sm:$0xf]
    %v385 = vld [vmem:[#allocation5 + $0x16c] sm:$0xf]
    %v386 = vld [vmem:[#allocation5 + $0x170] sm:$0xf]
    %v387 = vld [vmem:[#allocation5 + $0x174] sm:$0xf]
    %v388 = vld [vmem:[#allocation5 + $0x178] sm:$0xf]
    %v389 = vld [vmem:[#allocation5 + $0x17c] sm:$0xf]
    %v390 = vld [vmem:[#allocation5 + $0x180] sm:$0xf]
    %v391 = vld [vmem:[#allocation5 + $0x184] sm:$0xf]
    %v392 = vld [vmem:[#allocation5 + $0x188] sm:$0xf]
    %v393 = vld [vmem:[#allocation5 + $0x18c] sm:$0xf]
    %v394 = vld [vmem:[#allocation5 + $0x190] sm:$0xf]
    %v395 = vld [vmem:[#allocation5 + $0x194] sm:$0xf]
    %v396 = vld [vmem:[#allocation5 + $0x198] sm:$0xf]
    %v397 = vld [vmem:[#allocation5 + $0x19c] sm:$0xf]
    %v398 = vld [vmem:[#allocation5 + $0x1a0] sm:$0xf]
    %v399 = vld [vmem:[#allocation5 + $0x1a4] sm:$0xf]
    %v400 = vld [vmem:[#allocation5 + $0x1a8] sm:$0xf]
    %v401 = vld [vmem:[#allocation5 + $0x1ac] sm:$0xf]
    %v402 = vld [vmem:[#allocation5 + $0x1b0] sm:$0xf]
    %v403 = vld [vmem:[#allocation5 + $0x1b4] sm:$0xf]
    %v404 = vld [vmem:[#allocation5 + $0x1b8] sm:$0xf]
    %v405 = vld [vmem:[#allocation5 + $0x1bc] sm:$0xf]
    %v406 = vld [vmem:[#allocation5 + $0x1c0] sm:$0xf]
    %v407 = vld [vmem:[#allocation5 + $0x1c4] sm:$0xf]
    %v408 = vld [vmem:[#allocation5 + $0x1c8] sm:$0xf]
    %v409 = vld [vmem:[#allocation5 + $0x1cc] sm:$0xf]
    %v410 = vld [vmem:[#allocation5 + $0x1d0] sm:$0xf]
    %v411 = vld [vmem:[#allocation5 + $0x1d4] sm:$0xf]
    %v412 = vld [vmem:[#allocation5 + $0x1d8] sm:$0xf]
    %v413 = vld [vmem:[#allocation5 + $0x1dc] sm:$0xf]
    %v414 = vld [vmem:[#allocation5 + $0x1e0] sm:$0xf]
    %v415 = vld [vmem:[#allocation5 + $0x1e4] sm:$0xf]
    %v416 = vld [vmem:[#allocation5 + $0x1e8] sm:$0xf]
    %v417 = vld [vmem:[#allocation5 + $0x1ec] sm:$0xf]
    %v418 = vld [vmem:[#allocation5 + $0x1f0] sm:$0xf]
    %v419 = vld [vmem:[#allocation5 + $0x1f4] sm:$0xf]
    %v420 = vld [vmem:[#allocation5 + $0x1f8] sm:$0xf]
    %v421 = vld [vmem:[#allocation5 + $0x1fc] sm:$0xf]
    %v422 = vpack.c.bf16 %v286, %v286
    %v423 = vpack.c.bf16 %v287, %v287
    %v424 = vpack.c.bf16 %v288, %v288
    %v425 = vpack.c.bf16 %v289, %v289
    %v426 = vpack.c.bf16 %v290, %v290
    %v427 = vpack.c.bf16 %v291, %v291
    %v428 = vpack.c.bf16 %v292, %v292
    %v429 = vpack.c.bf16 %v293, %v293
    %v430 = vld [vmem:[%s2] sm:$0x1]
    %v432 = vlaneseq
    %v433 = vshrl.u32 %v432, 7
    %v434 = vsub.s32 0, %v433
    %v435 = vrot.slane %v430, %v434
    %v565 = vunpack.c.l.b16 %v294
    %v566 = vunpack.c.l.b16 %v295
    %v567 = vunpack.c.l.b16 %v296
    %v568 = vunpack.c.l.b16 %v297
    %v569 = vunpack.c.l.b16 %v298
    %v570 = vunpack.c.l.b16 %v299
    %v571 = vunpack.c.l.b16 %v300
    %v572 = vunpack.c.l.b16 %v301
    %v573 = vunpack.c.l.b16 %v302
    %v574 = vunpack.c.l.b16 %v303
    %v575 = vunpack.c.l.b16 %v304
    %v576 = vunpack.c.l.b16 %v305
    %v577 = vunpack.c.l.b16 %v306
    %v578 = vunpack.c.l.b16 %v307
    %v579 = vunpack.c.l.b16 %v308
    %v580 = vunpack.c.l.b16 %v309
    %v581 = vunpack.c.l.b16 %v310
    %v582 = vunpack.c.l.b16 %v311
    %v583 = vunpack.c.l.b16 %v312
    %v584 = vunpack.c.l.b16 %v313
    %v585 = vunpack.c.l.b16 %v314
    %v586 = vunpack.c.l.b16 %v315
    %v587 = vunpack.c.l.b16 %v316
    %v588 = vunpack.c.l.b16 %v317
    %v589 = vunpack.c.l.b16 %v318
    %v590 = vunpack.c.l.b16 %v319
    %v591 = vunpack.c.l.b16 %v320
    %v592 = vunpack.c.l.b16 %v321
    %v593 = vunpack.c.l.b16 %v322
    %v594 = vunpack.c.l.b16 %v323
    %v595 = vunpack.c.l.b16 %v324
    %v596 = vunpack.c.l.b16 %v325
    %v597 = vunpack.c.l.b16 %v326
    %v598 = vunpack.c.l.b16 %v327
    %v599 = vunpack.c.l.b16 %v328
    %v600 = vunpack.c.l.b16 %v329
    %v601 = vunpack.c.l.b16 %v330
    %v602 = vunpack.c.l.b16 %v331
    %v603 = vunpack.c.l.b16 %v332
    %v604 = vunpack.c.l.b16 %v333
    %v605 = vunpack.c.l.b16 %v334
    %v606 = vunpack.c.l.b16 %v335
    %v607 = vunpack.c.l.b16 %v336
    %v608 = vunpack.c.l.b16 %v337
    %v609 = vunpack.c.l.b16 %v338
    %v610 = vunpack.c.l.b16 %v339
    %v611 = vunpack.c.l.b16 %v340
    %v612 = vunpack.c.l.b16 %v341
    %v613 = vunpack.c.l.b16 %v342
    %v614 = vunpack.c.l.b16 %v343
    %v615 = vunpack.c.l.b16 %v344
    %v616 = vunpack.c.l.b16 %v345
    %v617 = vunpack.c.l.b16 %v346
    %v618 = vunpack.c.l.b16 %v347
    %v619 = vunpack.c.l.b16 %v348
    %v620 = vunpack.c.l.b16 %v349
    %v621 = vunpack.c.l.b16 %v350
    %v622 = vunpack.c.l.b16 %v351
    %v623 = vunpack.c.l.b16 %v352
    %v624 = vunpack.c.l.b16 %v353
    %v625 = vunpack.c.l.b16 %v354
    %v626 = vunpack.c.l.b16 %v355
    %v627 = vunpack.c.l.b16 %v356
    %v628 = vunpack.c.l.b16 %v357
    %v629 = vunpack.c.l.b16 %v358
    %v630 = vunpack.c.l.b16 %v359
    %v631 = vunpack.c.l.b16 %v360
    %v632 = vunpack.c.l.b16 %v361
    %v633 = vunpack.c.l.b16 %v362
    %v634 = vunpack.c.l.b16 %v363
    %v635 = vunpack.c.l.b16 %v364
    %v636 = vunpack.c.l.b16 %v365
    %v637 = vunpack.c.l.b16 %v366
    %v638 = vunpack.c.l.b16 %v367
    %v639 = vunpack.c.l.b16 %v368
    %v640 = vunpack.c.l.b16 %v369
    %v641 = vunpack.c.l.b16 %v370
    %v642 = vunpack.c.l.b16 %v371
    %v643 = vunpack.c.l.b16 %v372
    %v644 = vunpack.c.l.b16 %v373
    %v645 = vunpack.c.l.b16 %v374
    %v646 = vunpack.c.l.b16 %v375
    %v647 = vunpack.c.l.b16 %v376
    %v648 = vunpack.c.l.b16 %v377
    %v649 = vunpack.c.l.b16 %v378
    %v650 = vunpack.c.l.b16 %v379
    %v651 = vunpack.c.l.b16 %v380
    %v652 = vunpack.c.l.b16 %v381
    %v653 = vunpack.c.l.b16 %v382
    %v654 = vunpack.c.l.b16 %v383
    %v655 = vunpack.c.l.b16 %v384
    %v656 = vunpack.c.l.b16 %v385
    %v657 = vunpack.c.l.b16 %v386
    %v658 = vunpack.c.l.b16 %v387
    %v659 = vunpack.c.l.b16 %v388
    %v660 = vunpack.c.l.b16 %v389
    %v661 = vunpack.c.l.b16 %v390
    %v662 = vunpack.c.l.b16 %v391
    %v663 = vunpack.c.l.b16 %v392
    %v664 = vunpack.c.l.b16 %v393
    %v665 = vunpack.c.l.b16 %v394
    %v666 = vunpack.c.l.b16 %v395
    %v667 = vunpack.c.l.b16 %v396
    %v668 = vunpack.c.l.b16 %v397
    %v669 = vunpack.c.l.b16 %v398
    %v670 = vunpack.c.l.b16 %v399
    %v671 = vunpack.c.l.b16 %v400
    %v672 = vunpack.c.l.b16 %v401
    %v673 = vunpack.c.l.b16 %v402
    %v674 = vunpack.c.l.b16 %v403
    %v675 = vunpack.c.l.b16 %v404
    %v676 = vunpack.c.l.b16 %v405
    %v677 = vunpack.c.l.b16 %v406
    %v678 = vunpack.c.l.b16 %v407
    %v679 = vunpack.c.l.b16 %v408
    %v680 = vunpack.c.l.b16 %v409
    %v681 = vunpack.c.l.b16 %v410
    %v682 = vunpack.c.l.b16 %v411
    %v683 = vunpack.c.l.b16 %v412
    %v684 = vunpack.c.l.b16 %v413
    %v685 = vunpack.c.l.b16 %v414
    %v686 = vunpack.c.l.b16 %v415
    %v687 = vunpack.c.l.b16 %v416
    %v688 = vunpack.c.l.b16 %v417
    %v689 = vunpack.c.l.b16 %v418
    %v690 = vunpack.c.l.b16 %v419
    %v691 = vunpack.c.l.b16 %v420
    %v692 = vunpack.c.l.b16 %v421
    %v693 = vpack.c.b16 %v566, %v565
    %v694 = vpack.c.b16 %v568, %v567
    %v695 = vpack.c.b16 %v570, %v569
    %v696 = vpack.c.b16 %v572, %v571
    %v697 = vpack.c.b16 %v574, %v573
    %v698 = vpack.c.b16 %v576, %v575
    %v699 = vpack.c.b16 %v578, %v577
    %v700 = vpack.c.b16 %v580, %v579
    %v701 = vpack.c.b16 %v582, %v581
    %v702 = vpack.c.b16 %v584, %v583
    %v703 = vpack.c.b16 %v586, %v585
    %v704 = vpack.c.b16 %v588, %v587
    %v705 = vpack.c.b16 %v590, %v589
    %v706 = vpack.c.b16 %v592, %v591
    %v707 = vpack.c.b16 %v594, %v593
    %v708 = vpack.c.b16 %v596, %v595
    %v709 = vpack.c.b16 %v598, %v597
    %v710 = vpack.c.b16 %v600, %v599
    %v711 = vpack.c.b16 %v602, %v601
    %v712 = vpack.c.b16 %v604, %v603
    %v713 = vpack.c.b16 %v606, %v605
    %v714 = vpack.c.b16 %v608, %v607
    %v715 = vpack.c.b16 %v610, %v609
    %v716 = vpack.c.b16 %v612, %v611
    %v717 = vpack.c.b16 %v614, %v613
    %v718 = vpack.c.b16 %v616, %v615
    %v719 = vpack.c.b16 %v618, %v617
    %v720 = vpack.c.b16 %v620, %v619
    %v721 = vpack.c.b16 %v622, %v621
    %v722 = vpack.c.b16 %v624, %v623
    %v723 = vpack.c.b16 %v626, %v625
    %v724 = vpack.c.b16 %v628, %v627
    %v725 = vpack.c.b16 %v630, %v629
    %v726 = vpack.c.b16 %v632, %v631
    %v727 = vpack.c.b16 %v634, %v633
    %v728 = vpack.c.b16 %v636, %v635
    %v729 = vpack.c.b16 %v638, %v637
    %v730 = vpack.c.b16 %v640, %v639
    %v731 = vpack.c.b16 %v642, %v641
    %v732 = vpack.c.b16 %v644, %v643
    %v733 = vpack.c.b16 %v646, %v645
    %v734 = vpack.c.b16 %v648, %v647
    %v735 = vpack.c.b16 %v650, %v649
    %v736 = vpack.c.b16 %v652, %v651
    %v737 = vpack.c.b16 %v654, %v653
    %v738 = vpack.c.b16 %v656, %v655
    %v739 = vpack.c.b16 %v658, %v657
    %v740 = vpack.c.b16 %v660, %v659
    %v741 = vpack.c.b16 %v662, %v661
    %v742 = vpack.c.b16 %v664, %v663
    %v743 = vpack.c.b16 %v666, %v665
    %v744 = vpack.c.b16 %v668, %v667
    %v745 = vpack.c.b16 %v670, %v669
    %v746 = vpack.c.b16 %v672, %v671
    %v747 = vpack.c.b16 %v674, %v673
    %v748 = vpack.c.b16 %v676, %v675
    %v749 = vpack.c.b16 %v678, %v677
    %v750 = vpack.c.b16 %v680, %v679
    %v751 = vpack.c.b16 %v682, %v681
    %v752 = vpack.c.b16 %v684, %v683
    %v753 = vpack.c.b16 %v686, %v685
    %v754 = vpack.c.b16 %v688, %v687
    %v755 = vpack.c.b16 %v690, %v689
    %v756 = vpack.c.b16 %v692, %v691
    %821 = vmatprep.subr.bf16.mxu0 0
    %822 = vmatpush1.bf16.msra.mxu0 %v700
    %823 = vmatprep.subr.bf16.mxu0 0
    %824 = vmatpush1.bf16.msra.mxu0 %v699
    %825 = vmatprep.subr.bf16.mxu0 0
    %826 = vmatpush1.bf16.msra.mxu0 %v698
    %827 = vmatprep.subr.bf16.mxu0 0
    %828 = vmatpush1.bf16.msra.mxu0 %v697
    %829 = vmatprep.subr.bf16.mxu0 0
    %830 = vmatpush1.bf16.msra.mxu0 %v696
    %831 = vmatprep.subr.bf16.mxu0 0
    %832 = vmatpush1.bf16.msra.mxu0 %v695
    %833 = vmatprep.subr.bf16.mxu0 0
    %834 = vmatpush1.bf16.msra.mxu0 %v694
    %835 = vmatprep.subr.bf16.mxu0 0
    %836 = vmatpush1.bf16.msra.mxu0 %v693
    %837 = vmatprep.subr.bf16.mxu0 0
    %838 = vmatpush2.bf16.msra.mxu0 %v708
    %839 = vmatprep.subr.bf16.mxu0 0
    %840 = vmatpush2.bf16.msra.mxu0 %v707
    %841 = vmatprep.subr.bf16.mxu0 0
    %842 = vmatpush2.bf16.msra.mxu0 %v706
    %843 = vmatprep.subr.bf16.mxu0 0
    %844 = vmatpush2.bf16.msra.mxu0 %v705
    %845 = vmatprep.subr.bf16.mxu0 0
    %846 = vmatpush2.bf16.msra.mxu0 %v704
    %847 = vmatprep.subr.bf16.mxu0 0
    %848 = vmatpush2.bf16.msra.mxu0 %v703
    %849 = vmatprep.subr.bf16.mxu0 0
    %850 = vmatpush2.bf16.msra.mxu0 %v702
    %851 = vmatprep.subr.bf16.mxu0 0
    %852 = vmatpush2.bf16.msra.mxu0 %v701
    %853 = vmatprep.mubr.bf16.mxu0 %v423
    %854 = vmatmul.mubr.bf16.gmra.mxu0 %v422
    %v855 = vpop.f32.mrf.mxu0
    %v856 = vadd.f32 %v435, %v855
    %v857 = vpop.f32.mrf.mxu0
    %v858 = vpop.f32.mrf.mxu0
    %v859 = vpop.f32.mrf.mxu0
    %860 = vdwg.mxu0
    %861 = vmatprep.subr.bf16.mxu0 0
    %862 = vmatpush1.bf16.msra.mxu0 %v716
    %863 = vmatprep.subr.bf16.mxu0 0
    %864 = vmatpush1.bf16.msra.mxu0 %v715
    %865 = vmatprep.subr.bf16.mxu0 0
    %866 = vmatpush1.bf16.msra.mxu0 %v714
    %867 = vmatprep.subr.bf16.mxu0 0
    %868 = vmatpush1.bf16.msra.mxu0 %v713
    %869 = vmatprep.subr.bf16.mxu0 0
    %870 = vmatpush1.bf16.msra.mxu0 %v712
    %871 = vmatprep.subr.bf16.mxu0 0
    %872 = vmatpush1.bf16.msra.mxu0 %v711
    %873 = vmatprep.subr.bf16.mxu0 0
    %874 = vmatpush1.bf16.msra.mxu0 %v710
    %875 = vmatprep.subr.bf16.mxu0 0
    %876 = vmatpush1.bf16.msra.mxu0 %v709
    %877 = vmatprep.subr.bf16.mxu0 0
    %878 = vmatpush2.bf16.msra.mxu0 %v724
    %879 = vmatprep.subr.bf16.mxu0 0
    %880 = vmatpush2.bf16.msra.mxu0 %v723
    %881 = vmatprep.subr.bf16.mxu0 0
    %882 = vmatpush2.bf16.msra.mxu0 %v722
    %883 = vmatprep.subr.bf16.mxu0 0
    %884 = vmatpush2.bf16.msra.mxu0 %v721
    %885 = vmatprep.subr.bf16.mxu0 0
    %886 = vmatpush2.bf16.msra.mxu0 %v720
    %887 = vmatprep.subr.bf16.mxu0 0
    %888 = vmatpush2.bf16.msra.mxu0 %v719
    %889 = vmatprep.subr.bf16.mxu0 0
    %890 = vmatpush2.bf16.msra.mxu0 %v718
    %891 = vmatprep.subr.bf16.mxu0 0
    %892 = vmatpush2.bf16.msra.mxu0 %v717
    %893 = vmatprep.mubr.bf16.mxu0 %v425
    %894 = vmatmul.mubr.bf16.gmra.mxu0 %v424
    %v895 = vpop.f32.mrf.mxu0
    %v896 = vadd.f32 %v856, %v895
    %v897 = vpop.f32.mrf.mxu0
    %v898 = vpop.f32.mrf.mxu0
    %v899 = vpop.f32.mrf.mxu0
    %900 = vdwg.mxu0
    %901 = vmatprep.subr.bf16.mxu0 0
    %902 = vmatpush1.bf16.msra.mxu0 %v732
    %903 = vmatprep.subr.bf16.mxu0 0
    %904 = vmatpush1.bf16.msra.mxu0 %v731
    %905 = vmatprep.subr.bf16.mxu0 0
    %906 = vmatpush1.bf16.msra.mxu0 %v730
    %907 = vmatprep.subr.bf16.mxu0 0
    %908 = vmatpush1.bf16.msra.mxu0 %v729
    %909 = vmatprep.subr.bf16.mxu0 0
    %910 = vmatpush1.bf16.msra.mxu0 %v728
    %911 = vmatprep.subr.bf16.mxu0 0
    %912 = vmatpush1.bf16.msra.mxu0 %v727
    %913 = vmatprep.subr.bf16.mxu0 0
    %914 = vmatpush1.bf16.msra.mxu0 %v726
    %915 = vmatprep.subr.bf16.mxu0 0
    %916 = vmatpush1.bf16.msra.mxu0 %v725
    %917 = vmatprep.subr.bf16.mxu0 0
    %918 = vmatpush2.bf16.msra.mxu0 %v740
    %919 = vmatprep.subr.bf16.mxu0 0
    %920 = vmatpush2.bf16.msra.mxu0 %v739
    %921 = vmatprep.subr.bf16.mxu0 0
    %922 = vmatpush2.bf16.msra.mxu0 %v738
    %923 = vmatprep.subr.bf16.mxu0 0
    %924 = vmatpush2.bf16.msra.mxu0 %v737
    %925 = vmatprep.subr.bf16.mxu0 0
    %926 = vmatpush2.bf16.msra.mxu0 %v736
    %927 = vmatprep.subr.bf16.mxu0 0
    %928 = vmatpush2.bf16.msra.mxu0 %v735
    %929 = vmatprep.subr.bf16.mxu0 0
    %930 = vmatpush2.bf16.msra.mxu0 %v734
    %931 = vmatprep.subr.bf16.mxu0 0
    %932 = vmatpush2.bf16.msra.mxu0 %v733
    %933 = vmatprep.mubr.bf16.mxu0 %v427
    %934 = vmatmul.mubr.bf16.gmra.mxu0 %v426
    %v935 = vpop.f32.mrf.mxu0
    %v936 = vadd.f32 %v896, %v935
    %v937 = vpop.f32.mrf.mxu0
    %v938 = vpop.f32.mrf.mxu0
    %v939 = vpop.f32.mrf.mxu0
    %940 = vdwg.mxu0
    %941 = vmatprep.subr.bf16.mxu0 0
    %942 = vmatpush1.bf16.msra.mxu0 %v748
    %943 = vmatprep.subr.bf16.mxu0 0
    %944 = vmatpush1.bf16.msra.mxu0 %v747
    %945 = vmatprep.subr.bf16.mxu0 0
    %946 = vmatpush1.bf16.msra.mxu0 %v746
    %947 = vmatprep.subr.bf16.mxu0 0
    %948 = vmatpush1.bf16.msra.mxu0 %v745
    %949 = vmatprep.subr.bf16.mxu0 0
    %950 = vmatpush1.bf16.msra.mxu0 %v744
    %951 = vmatprep.subr.bf16.mxu0 0
    %952 = vmatpush1.bf16.msra.mxu0 %v743
    %953 = vmatprep.subr.bf16.mxu0 0
    %954 = vmatpush1.bf16.msra.mxu0 %v742
    %955 = vmatprep.subr.bf16.mxu0 0
    %956 = vmatpush1.bf16.msra.mxu0 %v741
    %957 = vmatprep.subr.bf16.mxu0 0
    %958 = vmatpush2.bf16.msra.mxu0 %v756
    %959 = vmatprep.subr.bf16.mxu0 0
    %960 = vmatpush2.bf16.msra.mxu0 %v755
    %961 = vmatprep.subr.bf16.mxu0 0
    %962 = vmatpush2.bf16.msra.mxu0 %v754
    %963 = vmatprep.subr.bf16.mxu0 0
    %964 = vmatpush2.bf16.msra.mxu0 %v753
    %965 = vmatprep.subr.bf16.mxu0 0
    %966 = vmatpush2.bf16.msra.mxu0 %v752
    %967 = vmatprep.subr.bf16.mxu0 0
    %968 = vmatpush2.bf16.msra.mxu0 %v751
    %969 = vmatprep.subr.bf16.mxu0 0
    %970 = vmatpush2.bf16.msra.mxu0 %v750
    %971 = vmatprep.subr.bf16.mxu0 0
    %972 = vmatpush2.bf16.msra.mxu0 %v749
    %973 = vmatprep.mubr.bf16.mxu0 %v429
    %974 = vmatmul.mubr.bf16.gmra.mxu0 %v428
    %v975 = vpop.f32.mrf.mxu0
    %v976 = vadd.f32 %v936, %v975
    %v977 = vpop.f32.mrf.mxu0
    %v978 = vpop.f32.mrf.mxu0
    %v979 = vpop.f32.mrf.mxu0
    %980 = vdwg.mxu0
    %981 = vst [vmem:[#allocation7] sm:$0x3] %v976
    // Predicated region
    $region22: #{vgg_classifier_forward.1} parent=1 // pred_check
      _
    $region23: #{vgg_classifier_forward.1} parent=1 // pred_check_branch
      %983 = sbr.rel (0) target = $region25
    $region24: #{vgg_classifier_forward.1} parent=1 // pred_region
      %s985 = ssub.s32 32, 32
      %986 = vsyncadd [#allocation4], %s985
      %s988 = sshll.u32 [#allocation7], 4
      %s989 = int_to_ptr.vmem [resolvable:$true] %s988
      %991 = dma.vmem_to_hbm [thread:$0]  %s989, 32, %s3, [#allocation4]
    $region25: #{vgg_classifier_forward.1} parent=1 // pred_fallthru
      _
    // Predicated region
    $region26: #{vgg_classifier_forward.1} parent=1 // pred_check
      _
    $region27: #{vgg_classifier_forward.1} parent=1 // pred_check_branch
      %993 = sbr.rel (0) target = $region29
    $region28: #{vgg_classifier_forward.1} parent=1 // pred_region
      %994 = dma.done [#allocation4], 32
    $region29: #{vgg_classifier_forward.1} parent=1 // pred_fallthru
      _
    %995 = vsyncpa [#allocation3], 1
    %996 = vsyncpa [#allocation6], 1
    %997 = vsyncpa [#allocation4], 1

</llo_original>
